<compile_context>
chip_gen: v7x
topology: tpu7x:2x2x1
jax: 0.10.0
libtpu: 0.0.40
codegen_flags: <defaults>
</compile_context>

<pallas_src>
import jax
import jax.numpy as jnp
from jax.experimental import pallas as pl
from jax.experimental.pallas import tpu as pltpu


def _round_up(x, m):
    return ((x + m - 1) // m) * m


# ---------------------------------------------------------------------------
# Kernels
# ---------------------------------------------------------------------------

def _mlp_q(x_ref, w1_ref, b1_ref, w2_ref, b2_ref, w3_ref, b3_ref):
    # Fused 3-layer MLP: relu(relu(x@W1+b1)@W2+b2)@W3+b3.
    # Matmul operands may be bf16; accumulation, bias add and ReLU are f32 (safe on v5e's
    # f32-only VPU).  Activations are cast back to the weight dtype so layers 2/3 also hit
    # the bf16 MXU fast path (this is the documented source of the ~1e-1 bf16 tolerance).
    x = x_ref[...]
    h = jnp.dot(x, w1_ref[...], preferred_element_type=jnp.float32) + b1_ref[...]
    h = jnp.maximum(h, 0.0).astype(w2_ref.dtype)
    h = jnp.dot(h, w2_ref[...], preferred_element_type=jnp.float32) + b2_ref[...]
    h = jnp.maximum(h, 0.0).astype(w3_ref.dtype)
    return jnp.dot(h, w3_ref[...], preferred_element_type=jnp.float32) + b3_ref[...]


def _mlp_kernel(x_ref, w1_ref, b1_ref, w2_ref, b2_ref, w3_ref, b3_ref, o_ref):
    o_ref[...] = _mlp_q(x_ref, w1_ref, b1_ref, w2_ref, b2_ref,
                        w3_ref, b3_ref).astype(o_ref.dtype)


def _mlp_argmax_kernel(x_ref, w1_ref, b1_ref, w2_ref, b2_ref, w3_ref, b3_ref, a_ref):
    # Fused action-selection path: argmax over actions in-kernel; writes [tile, 1] int32
    # instead of the full Q block (first maximal index, matching torch.argmax semantics).
    q = _mlp_q(x_ref, w1_ref, b1_ref, w2_ref, b2_ref, w3_ref, b3_ref)
    n = q.shape[-1]
    col = jax.lax.broadcasted_iota(jnp.int32, q.shape, 1)
    m = jnp.max(q, axis=-1, keepdims=True)
    idx = jnp.min(jnp.where(q >= m, col, n), axis=-1, keepdims=True)
    a_ref[...] = idx.astype(jnp.int32)


# ---------------------------------------------------------------------------
# Parameter preparation (call once, outside the hot path)
# ---------------------------------------------------------------------------

def init_params(key, obs_dim, hidden_layers, n_actions):
    """Deterministic synthetic init: [in, out] weights, zero biases (f32, unpadded)."""
    dims = [obs_dim] + list(hidden_layers) + [n_actions]
    params = {}
    keys = jax.random.split(key, len(dims) - 1)
    for idx, (d_in, d_out) in enumerate(zip(dims[:-1], dims[1:]), start=1):
        w = jax.random.normal(keys[idx - 1], (d_in, d_out), jnp.float32) / jnp.sqrt(d_in)
        params[f"w{idx}"] = w
        params[f"b{idx}"] = jnp.zeros((d_out,), jnp.float32)
    return params


def prepare_params(params, *, compute_dtype=jnp.float32):
    """Pad hidden dims to multiples of 128 and cast weights ONCE.

    obs_dim (layer-1 contraction) and n_actions (layer-3 output) are intentionally left
    unpadded: block dims equal to the full array dim are exempt from the (8,128) rule, and
    padding them only inflates HBM traffic.  Biases stay f32 as [1, out] rows.
    compute_dtype=jnp.bfloat16 is a valid MXU fast path on v5e, v6e and v7x.
    """
    w1, b1 = params["w1"], params["b1"]
    w2, b2 = params["w2"], params["b2"]
    w3, b3 = params["w3"], params["b3"]
    obs_dim, h1 = w1.shape
    h2, n_act = w2.shape[1], w3.shape[1]
    h1_p, h2_p = _round_up(h1, 128), _round_up(h2, 128)

    def pad2(a, rows, cols):
        a = a.reshape((1, -1)) if a.ndim == 1 else a
        return jnp.pad(a, ((0, rows - a.shape[0]), (0, cols - a.shape[1])))

    return {
        "w1": pad2(w1, obs_dim, h1_p).astype(compute_dtype),
        "b1": pad2(b1, 1, h1_p).astype(jnp.float32),
        "w2": pad2(w2, h1_p, h2_p).astype(compute_dtype),
        "b2": pad2(b2, 1, h2_p).astype(jnp.float32),
        "w3": pad2(w3, h2_p, n_act).astype(compute_dtype),
        "b3": pad2(b3, 1, n_act).astype(jnp.float32),
    }


# ---------------------------------------------------------------------------
# Forward / predict wrappers
# ---------------------------------------------------------------------------

def _call_fused_mlp(kernel, obs, prepared, out_features, out_dtype,
                    batch_tile, min_grid_steps):
    w1, b1 = prepared["w1"], prepared["b1"]
    w2, b2 = prepared["w2"], prepared["b2"]
    w3, b3 = prepared["w3"], prepared["b3"]
    compute_dtype = w1.dtype

    B, obs_dim = obs.shape
    assert obs_dim == w1.shape[0], "obs feature dim must match w1 input dim"
    h1_p, h2_p, n_act = w1.shape[1], w2.shape[1], w3.shape[1]

    # Native sublane multiple for the batch tile: 8 rows f32, 16 rows bf16, 32 rows 8-bit.
    mult = max(8, 32 // jnp.dtype(compute_dtype).itemsize)
    tile = min(batch_tile, _round_up(B, mult))
    if min_grid_steps > 1 and B > mult:
        # Keep >= min_grid_steps grid steps so the "parallel" batch axis can shard across
        # v7x's two TensorCores (no-op on the 1-TC v5e/v6e beyond one extra ~0.35us step).
        tile = min(tile, _round_up(pl.cdiv(B, min_grid_steps), mult))
    tile = max(mult, _round_up(tile, mult))
    B_p = _round_up(B, tile)

    x = obs if obs.dtype == compute_dtype else obs.astype(compute_dtype)
    if B_p != B:
        # Padded batch rows do pick up the biases through the layers; they are discarded by
        # the final slice -- never reduce over the padded output.
        x = jnp.pad(x, ((0, B_p - B), (0, 0)))

    grid = (B_p // tile,)
    out = pl.pallas_call(
        kernel,
        out_shape=jax.ShapeDtypeStruct((B_p, out_features), out_dtype),
        grid=grid,
        in_specs=[
            # obs tiled over the (padded) batch; feature dim is the full (unpadded) obs_dim.
            pl.BlockSpec((tile, obs_dim), lambda i: (i, 0)),
            # Weights / biases: constant block index -> fetched once, resident across steps.
            pl.BlockSpec((obs_dim, h1_p), lambda i: (0, 0)),
            pl.BlockSpec((1, h1_p), lambda i: (0, 0)),
            pl.BlockSpec((h1_p, h2_p), lambda i: (0, 0)),
            pl.BlockSpec((1, h2_p), lambda i: (0, 0)),
            pl.BlockSpec((h2_p, n_act), lambda i: (0, 0)),
            pl.BlockSpec((1, n_act), lambda i: (0, 0)),
        ],
        out_specs=pl.BlockSpec((tile, out_features), lambda i: (i, 0)),
        compiler_params=pltpu.CompilerParams(
            dimension_semantics=("parallel",),
        ),
    )(x, w1, b1, w2, b2, w3, b3)

    return out[:B] if B_p != B else out


def discrete_mlp_critic_forward(obs, prepared, *, batch_tile=1024, min_grid_steps=2):
    """obs: [B, obs_dim].  prepared: output of prepare_params().  Returns f32 [B, n_actions]."""
    n_act = prepared["w3"].shape[1]
    return _call_fused_mlp(_mlp_kernel, obs, prepared, n_act, jnp.float32,
                           batch_tile, min_grid_steps)


def discrete_mlp_critic_predict(obs, prepared, *, batch_tile=1024, min_grid_steps=2):
    """Fused action selection: returns int32 [B] = argmax over actions (first maximal index)."""
    act = _call_fused_mlp(_mlp_argmax_kernel, obs, prepared, 1, jnp.int32,
                          batch_tile, min_grid_steps)
    return act[:, 0]


def reference_forward(obs, params):
    h = jnp.maximum(obs @ params["w1"] + params["b1"][None, :], 0.0)
    h = jnp.maximum(h @ params["w2"] + params["b2"][None, :], 0.0)
    return h @ params["w3"] + params["b3"][None, :]


if __name__ == "__main__":
    # Shapes consistent with the module defaults: obs_dim=16, hidden=[256,256], n_actions=8.
    # batch=37 exercises the batch-padding + multi-step grid paths.
    key = jax.random.PRNGKey(0)
    k_obs, k_params = jax.random.split(key)

    batch, obs_dim, n_actions = 37, 16, 8
    hidden_layers = [256, 256]

    obs = jax.random.normal(k_obs, (batch, obs_dim), jnp.float32)
    params = init_params(k_params, obs_dim, hidden_layers, n_actions)
    q_ref = reference_forward(obs, params)

    # f32 operands: near-exact match with the reference.
    prepared_f32 = prepare_params(params, compute_dtype=jnp.float32)
    q = jax.block_until_ready(discrete_mlp_critic_forward(obs, prepared_f32))
    assert q.shape == (batch, n_actions)
    assert q.dtype == jnp.float32
    assert jnp.allclose(q, q_ref, atol=1e-4, rtol=1e-4)

    # bf16 matmul operands (MXU fast path on v5e/v6e/v7x), f32 accumulation: looser tolerance.
    prepared_bf16 = prepare_params(params, compute_dtype=jnp.bfloat16)
    q_bf16 = jax.block_until_ready(discrete_mlp_critic_forward(obs, prepared_bf16))
    assert q_bf16.shape == (batch, n_actions)
    assert jnp.allclose(q_bf16, q_ref, atol=1e-1, rtol=1e-1)

    # Fused predict(): matches argmax of the kernel's own f32 Q-values.
    act = jax.block_until_ready(discrete_mlp_critic_predict(obs, prepared_f32))
    assert act.shape == (batch,)
    assert jnp.all(act == jnp.argmax(q, axis=-1))

    # TODO(synk): ortho_init / output_gain are initialization-time only and have no runtime
    # kernel equivalent; they are irrelevant to the forward pass implemented here.
    print("KERNEL_OK")
</pallas_src>

<mosaic_0001>
module attributes {stable_mosaic.version = 11 : i64} {
  func.func @_mlp_kernel(%arg0: i32, %arg1: memref<24x16xf32, #tpu.memory_space<vmem>>, %arg2: memref<16x256xf32, #tpu.memory_space<vmem>>, %arg3: memref<1x256xf32, #tpu.memory_space<vmem>>, %arg4: memref<256x256xf32, #tpu.memory_space<vmem>>, %arg5: memref<1x256xf32, #tpu.memory_space<vmem>>, %arg6: memref<256x8xf32, #tpu.memory_space<vmem>>, %arg7: memref<1x8xf32, #tpu.memory_space<vmem>>, %arg8: memref<24x8xf32, #tpu.memory_space<vmem>>) attributes {dimension_semantics = [#tpu.dimension_semantics<parallel>], iteration_bounds = array<i64: 2>, scalar_prefetch = 0 : i64, scratch_operands = 0 : i64, tpu.core_type = #tpu.core_type<tc>, window_params = [{transform_indices = @transform_0, window_bounds = array<i64: 24, 16>}, {pipeline_mode = #tpu.pipeline_mode<synchronous>, transform_indices = @transform_1, window_bounds = array<i64: 16, 256>}, {pipeline_mode = #tpu.pipeline_mode<synchronous>, transform_indices = @transform_2, window_bounds = array<i64: 1, 256>}, {pipeline_mode = #tpu.pipeline_mode<synchronous>, transform_indices = @transform_3, window_bounds = array<i64: 256, 256>}, {pipeline_mode = #tpu.pipeline_mode<synchronous>, transform_indices = @transform_4, window_bounds = array<i64: 1, 256>}, {pipeline_mode = #tpu.pipeline_mode<synchronous>, transform_indices = @transform_5, window_bounds = array<i64: 256, 8>}, {pipeline_mode = #tpu.pipeline_mode<synchronous>, transform_indices = @transform_6, window_bounds = array<i64: 1, 8>}, {transform_indices = @transform_7, window_bounds = array<i64: 24, 8>}]} {
    %c0 = arith.constant 0 : index
    %c0_0 = arith.constant 0 : index
    %0 = vector.load %arg1[%c0, %c0_0] : memref<24x16xf32, #tpu.memory_space<vmem>>, vector<24x16xf32>
    %c0_1 = arith.constant 0 : index
    %c0_2 = arith.constant 0 : index
    %1 = vector.load %arg2[%c0_1, %c0_2] : memref<16x256xf32, #tpu.memory_space<vmem>>, vector<16x256xf32>
    %cst = arith.constant dense<0.000000e+00> : vector<24x256xf32>
    %2 = tpu.matmul %0, %1, %cst {dimension_numbers = #tpu.dot_dimension_numbers<[1], [0], [0], [1], [0, 0, 1, 1], [], []>} : vector<24x16xf32>, vector<16x256xf32>, vector<24x256xf32> -> vector<24x256xf32>
    %c0_3 = arith.constant 0 : index
    %c0_4 = arith.constant 0 : index
    %3 = vector.load %arg3[%c0_3, %c0_4] : memref<1x256xf32, #tpu.memory_space<vmem>>, vector<1x256xf32>
    %4 = vector.broadcast %3 : vector<1x256xf32> to vector<24x256xf32>
    %5 = arith.addf %2, %4 : vector<24x256xf32>
    %cst_5 = arith.constant 0.000000e+00 : f32
    %6 = vector.broadcast %cst_5 : f32 to vector<24x256xf32>
    %7 = arith.maximumf %5, %6 : vector<24x256xf32>
    %c0_6 = arith.constant 0 : index
    %c0_7 = arith.constant 0 : index
    %8 = vector.load %arg4[%c0_6, %c0_7] : memref<256x256xf32, #tpu.memory_space<vmem>>, vector<256x256xf32>
    %cst_8 = arith.constant dense<0.000000e+00> : vector<24x256xf32>
    %9 = tpu.matmul %7, %8, %cst_8 {dimension_numbers = #tpu.dot_dimension_numbers<[1], [0], [0], [1], [0, 0, 1, 1], [], []>} : vector<24x256xf32>, vector<256x256xf32>, vector<24x256xf32> -> vector<24x256xf32>
    %c0_9 = arith.constant 0 : index
    %c0_10 = arith.constant 0 : index
    %10 = vector.load %arg5[%c0_9, %c0_10] : memref<1x256xf32, #tpu.memory_space<vmem>>, vector<1x256xf32>
    %11 = vector.broadcast %10 : vector<1x256xf32> to vector<24x256xf32>
    %12 = arith.addf %9, %11 : vector<24x256xf32>
    %cst_11 = arith.constant 0.000000e+00 : f32
    %13 = vector.broadcast %cst_11 : f32 to vector<24x256xf32>
    %14 = arith.maximumf %12, %13 : vector<24x256xf32>
    %c0_12 = arith.constant 0 : index
    %c0_13 = arith.constant 0 : index
    %15 = vector.load %arg6[%c0_12, %c0_13] : memref<256x8xf32, #tpu.memory_space<vmem>>, vector<256x8xf32>
    %cst_14 = arith.constant dense<0.000000e+00> : vector<24x8xf32>
    %16 = tpu.matmul %14, %15, %cst_14 {dimension_numbers = #tpu.dot_dimension_numbers<[1], [0], [0], [1], [0, 0, 1, 1], [], []>} : vector<24x256xf32>, vector<256x8xf32>, vector<24x8xf32> -> vector<24x8xf32>
    %c0_15 = arith.constant 0 : index
    %c0_16 = arith.constant 0 : index
    %17 = vector.load %arg7[%c0_15, %c0_16] : memref<1x8xf32, #tpu.memory_space<vmem>>, vector<1x8xf32>
    %18 = vector.broadcast %17 : vector<1x8xf32> to vector<24x8xf32>
    %19 = arith.addf %16, %18 : vector<24x8xf32>
    %c0_17 = arith.constant 0 : index
    %c0_18 = arith.constant 0 : index
    %20 = vector.load %arg8[%c0_17, %c0_18] : memref<24x8xf32, #tpu.memory_space<vmem>>, vector<24x8xf32>
    tpu.vector_store %arg8[%c0_17, %c0_18], %19 {strides = array<i32>} : memref<24x8xf32, #tpu.memory_space<vmem>>, vector<24x8xf32>,
    return
  }
  func.func @transform_0(%arg0: i32) -> (i32, i32) {
    %c0_i32 = arith.constant 0 : i32
    %c0_i32_0 = arith.constant 0 : i32
    return %arg0, %c0_i32 : i32, i32
  }
  func.func @transform_1(%arg0: i32) -> (i32, i32) {
    %c0_i32 = arith.constant 0 : i32
    %c0_i32_0 = arith.constant 0 : i32
    %c0_i32_1 = arith.constant 0 : i32
    return %c0_i32, %c0_i32_0 : i32, i32
  }
  func.func @transform_2(%arg0: i32) -> (i32, i32) {
    %c0_i32 = arith.constant 0 : i32
    %c0_i32_0 = arith.constant 0 : i32
    %c0_i32_1 = arith.constant 0 : i32
    return %c0_i32, %c0_i32_0 : i32, i32
  }
  func.func @transform_3(%arg0: i32) -> (i32, i32) {
    %c0_i32 = arith.constant 0 : i32
    %c0_i32_0 = arith.constant 0 : i32
    %c0_i32_1 = arith.constant 0 : i32
    return %c0_i32, %c0_i32_0 : i32, i32
  }
  func.func @transform_4(%arg0: i32) -> (i32, i32) {
    %c0_i32 = arith.constant 0 : i32
    %c0_i32_0 = arith.constant 0 : i32
    %c0_i32_1 = arith.constant 0 : i32
    return %c0_i32, %c0_i32_0 : i32, i32
  }
  func.func @transform_5(%arg0: i32) -> (i32, i32) {
    %c0_i32 = arith.constant 0 : i32
    %c0_i32_0 = arith.constant 0 : i32
    %c0_i32_1 = arith.constant 0 : i32
    return %c0_i32, %c0_i32_0 : i32, i32
  }
  func.func @transform_6(%arg0: i32) -> (i32, i32) {
    %c0_i32 = arith.constant 0 : i32
    %c0_i32_0 = arith.constant 0 : i32
    %c0_i32_1 = arith.constant 0 : i32
    return %c0_i32, %c0_i32_0 : i32, i32
  }
  func.func @transform_7(%arg0: i32) -> (i32, i32) {
    %c0_i32 = arith.constant 0 : i32
    %c0_i32_0 = arith.constant 0 : i32
    return %arg0, %c0_i32 : i32, i32
  }
}

</mosaic_0001>

<llo_original>
// kernel: tpu_custom_call.1
$region0: #{tpu_custom_call.1}
  #allocation0 [shape = 'u32[]', space=smem, size = 0x4, offset = 0x4, fixed_abs, tag = 'smem constant byte address 0x4 - core index']
  #allocation1 [shape = 'u32[144,128]{1,0:T(1,128)}', space=vmem, size = 0x12000, scoped, tag = 'internal scratch']
  %s0 = inlined_call_operand.vmem [shape: f32[48,16], index: 0, kind: input, shape index: {}]
  %s1 = inlined_call_operand.vmem [shape: f32[16,256], index: 1, kind: input, shape index: {}]
  %s2 = inlined_call_operand.vmem [shape: f32[1,256], index: 2, kind: input, shape index: {}]
  %s3 = inlined_call_operand.hbm [shape: f32[256,256], index: 3, kind: input, shape index: {}]
  %s4 = inlined_call_operand.vmem [shape: f32[1,256], index: 4, kind: input, shape index: {}]
  %s5 = inlined_call_operand.vmem [shape: f32[256,8], index: 5, kind: input, shape index: {}]
  %s6 = inlined_call_operand.vmem [shape: f32[1,8], index: 6, kind: input, shape index: {}]
  %s7 = inlined_call_operand.vmem [shape: f32[48,8], index: 7, kind: output, shape index: {}]
  %s8 = sld [smem:[#allocation0]]
  $region65: #{tpu_custom_call.1} parent=0
    _
  %s10 = ssub.s32 1, %s8
  %s11 = scalar_select 0, %s10, %s8
  $region1: #{tpu_custom_call.1} parent=0
    #allocation2 [shape = 'u8[262144]{0}', space=vmem, size = 0x40000, scoped, tag = 'input window, operand 3, single buffered']
    #allocation3 [shape = 's32[2]{0}', space=sflag, size = 0x8, scoped, tag = 'scoped memory for tpu_custom_call.1']
    %12 = vsyncpa [#allocation3], 0
    loop: start=0, step=1, limit=4
    $region2: #{tpu_custom_call.1} parent=1 // loop_pre_header
      _
    $region3: #{tpu_custom_call.1} parent=1 // loop_header
      %s14 = sphi 0, %s18
      %p15 = scmp.ge.s32.totalorder %s14, 4
      %s24 = sphi 0, %s26
      %s27 = sphi 0, %s24
      %s28 = sphi 0, %s27
      %s44 = sphi 0, %s28
      %s48 = sphi 0, %s48
      %s50 = sphi 0, %s48
      %s51 = sphi 0, %s50
      %s65 = sphi 0, %s51
      %s69 = sphi 0, %s69
      %s71 = sphi 0, %s69
      %s72 = sphi 0, %s71
      %s86 = sphi 0, %s72
      %s90 = sphi 0, %s90
      %s92 = sphi 0, %s90
      %s93 = sphi 0, %s92
      %s107 = sphi 0, %s93
      %s111 = sphi 0, %s111
      %s113 = sphi 0, %s111
      %s114 = sphi 0, %s113
      %s128 = sphi 0, %s114
      %s132 = sphi 0, %s132
      %s134 = sphi 0, %s132
      %s135 = sphi 0, %s134
      %s149 = sphi 0, %s135
      %s153 = sphi 0, %s153
      %s155 = sphi 0, %s153
      %s156 = sphi 0, %s155
      %s170 = sphi 0, %s156
      %s176 = sphi 0, %s178
      %s179 = sphi 0, %s176
      %s180 = sphi 0, %s179
      %s196 = sphi 0, %s180
    $region4: #{tpu_custom_call.1} parent=1 // loop_header_branch
      %17 = sbr.rel (%p15) target = $region8
    $region5: #{tpu_custom_call.1} parent=1 // loop_body
      %s19 = ssub.s32 %s14, 1
      %s20 = ssub.s32 %s14, 2
      %s21 = sadd.s32 %s14, 1
      %s22 = ssub.s32 %s14, %s21
      %p23 = scmp.eq.s32.totalorder %s22, 0
      %s25 = sadd.s32 %s24, 1
      %s26 = scalar_select %p23, %s24, %s25
      %p29 = pneg %p23
      %p30 = scmp.eq.s32.totalorder %s14, 1
      %p31 = por %p29, %p30
      %p32 = scmp.ne.s32.totalorder %s24, %s27
      %p33 = scmp.eq.s32.totalorder %s14, 0
      %p34 = por %p32, %p33
      %p35 = scmp.ne.s32.totalorder %s24, %s27
      %p36 = scmp.eq.s32.totalorder %s19, 1
      %p37 = por %p35, %p36
      %p38 = scmp.ne.s32.totalorder %s27, %s28
      %p39 = scmp.eq.s32.totalorder %s19, 0
      %p40 = por %p38, %p39
      %p41 = scmp.ne.s32.totalorder %s27, %s28
      %p42 = scmp.eq.s32.totalorder %s20, 1
      %p43 = por %p41, %p42
      %p45 = scmp.ne.s32.totalorder %s28, %s44
      %p46 = scmp.eq.s32.totalorder %s20, 0
      %p47 = por %p45, %p46
      %s49 = sadd.s32 %s48, 1
      %p52 = scmp.eq.s32.totalorder %s14, 1
      %p53 = scmp.ne.s32.totalorder %s48, %s50
      %p54 = scmp.eq.s32.totalorder %s14, 0
      %p55 = por %p53, %p54
      %p56 = scmp.ne.s32.totalorder %s48, %s50
      %p57 = scmp.eq.s32.totalorder %s19, 1
      %p58 = por %p56, %p57
      %p59 = scmp.ne.s32.totalorder %s50, %s51
      %p60 = scmp.eq.s32.totalorder %s19, 0
      %p61 = por %p59, %p60
      %p62 = scmp.ne.s32.totalorder %s50, %s51
      %p63 = scmp.eq.s32.totalorder %s20, 1
      %p64 = por %p62, %p63
      %p66 = scmp.ne.s32.totalorder %s51, %s65
      %p67 = scmp.eq.s32.totalorder %s20, 0
      %p68 = por %p66, %p67
      %s70 = sadd.s32 %s69, 1
      %p73 = scmp.eq.s32.totalorder %s14, 1
      %p74 = scmp.ne.s32.totalorder %s69, %s71
      %p75 = scmp.eq.s32.totalorder %s14, 0
      %p76 = por %p74, %p75
      %p77 = scmp.ne.s32.totalorder %s69, %s71
      %p78 = scmp.eq.s32.totalorder %s19, 1
      %p79 = por %p77, %p78
      %p80 = scmp.ne.s32.totalorder %s71, %s72
      %p81 = scmp.eq.s32.totalorder %s19, 0
      %p82 = por %p80, %p81
      %p83 = scmp.ne.s32.totalorder %s71, %s72
      %p84 = scmp.eq.s32.totalorder %s20, 1
      %p85 = por %p83, %p84
      %p87 = scmp.ne.s32.totalorder %s72, %s86
      %p88 = scmp.eq.s32.totalorder %s20, 0
      %p89 = por %p87, %p88
      %s91 = sadd.s32 %s90, 1
      %p94 = scmp.eq.s32.totalorder %s14, 1
      %p95 = scmp.ne.s32.totalorder %s90, %s92
      %p96 = scmp.eq.s32.totalorder %s14, 0
      %p97 = por %p95, %p96
      %p98 = scmp.ne.s32.totalorder %s90, %s92
      %p99 = scmp.eq.s32.totalorder %s19, 1
      %p100 = por %p98, %p99
      %p101 = scmp.ne.s32.totalorder %s92, %s93
      %p102 = scmp.eq.s32.totalorder %s19, 0
      %p103 = por %p101, %p102
      %p104 = scmp.ne.s32.totalorder %s92, %s93
      %p105 = scmp.eq.s32.totalorder %s20, 1
      %p106 = por %p104, %p105
      %p108 = scmp.ne.s32.totalorder %s93, %s107
      %p109 = scmp.eq.s32.totalorder %s20, 0
      %p110 = por %p108, %p109
      %s112 = sadd.s32 %s111, 1
      %p115 = scmp.eq.s32.totalorder %s14, 1
      %p116 = scmp.ne.s32.totalorder %s111, %s113
      %p117 = scmp.eq.s32.totalorder %s14, 0
      %p118 = por %p116, %p117
      %p119 = scmp.ne.s32.totalorder %s111, %s113
      %p120 = scmp.eq.s32.totalorder %s19, 1
      %p121 = por %p119, %p120
      %p122 = scmp.ne.s32.totalorder %s113, %s114
      %p123 = scmp.eq.s32.totalorder %s19, 0
      %p124 = por %p122, %p123
      %p125 = scmp.ne.s32.totalorder %s113, %s114
      %p126 = scmp.eq.s32.totalorder %s20, 1
      %p127 = por %p125, %p126
      %p129 = scmp.ne.s32.totalorder %s114, %s128
      %p130 = scmp.eq.s32.totalorder %s20, 0
      %p131 = por %p129, %p130
      %s133 = sadd.s32 %s132, 1
      %p136 = scmp.eq.s32.totalorder %s14, 1
      %p137 = scmp.ne.s32.totalorder %s132, %s134
      %p138 = scmp.eq.s32.totalorder %s14, 0
      %p139 = por %p137, %p138
      %p140 = scmp.ne.s32.totalorder %s132, %s134
      %p141 = scmp.eq.s32.totalorder %s19, 1
      %p142 = por %p140, %p141
      %p143 = scmp.ne.s32.totalorder %s134, %s135
      %p144 = scmp.eq.s32.totalorder %s19, 0
      %p145 = por %p143, %p144
      %p146 = scmp.ne.s32.totalorder %s134, %s135
      %p147 = scmp.eq.s32.totalorder %s20, 1
      %p148 = por %p146, %p147
      %p150 = scmp.ne.s32.totalorder %s135, %s149
      %p151 = scmp.eq.s32.totalorder %s20, 0
      %p152 = por %p150, %p151
      %s154 = sadd.s32 %s153, 1
      %p157 = scmp.eq.s32.totalorder %s14, 1
      %p158 = scmp.ne.s32.totalorder %s153, %s155
      %p159 = scmp.eq.s32.totalorder %s14, 0
      %p160 = por %p158, %p159
      %p161 = scmp.ne.s32.totalorder %s153, %s155
      %p162 = scmp.eq.s32.totalorder %s19, 1
      %p163 = por %p161, %p162
      %p164 = scmp.ne.s32.totalorder %s155, %s156
      %p165 = scmp.eq.s32.totalorder %s19, 0
      %p166 = por %p164, %p165
      %p167 = scmp.ne.s32.totalorder %s155, %s156
      %p168 = scmp.eq.s32.totalorder %s20, 1
      %p169 = por %p167, %p168
      %p171 = scmp.ne.s32.totalorder %s156, %s170
      %p172 = scmp.eq.s32.totalorder %s20, 0
      %p173 = por %p171, %p172
      %s174 = ssub.s32 %s14, %s21
      %p175 = scmp.eq.s32.totalorder %s174, 0
      %s177 = sadd.s32 %s176, 1
      %s178 = scalar_select %p175, %s176, %s177
      %p181 = pneg %p175
      %p182 = scmp.eq.s32.totalorder %s14, 1
      %p183 = por %p181, %p182
      %p184 = scmp.ne.s32.totalorder %s176, %s179
      %p185 = scmp.eq.s32.totalorder %s14, 0
      %p186 = por %p184, %p185
      %p187 = scmp.ne.s32.totalorder %s176, %s179
      %p188 = scmp.eq.s32.totalorder %s19, 1
      %p189 = por %p187, %p188
      %p190 = scmp.ne.s32.totalorder %s179, %s180
      %p191 = scmp.eq.s32.totalorder %s19, 0
      %p192 = por %p190, %p191
      %p193 = scmp.ne.s32.totalorder %s179, %s180
      %p194 = scmp.eq.s32.totalorder %s20, 1
      %p195 = por %p193, %p194
      %p197 = scmp.ne.s32.totalorder %s180, %s196
      %p198 = scmp.eq.s32.totalorder %s20, 0
      %p199 = por %p197, %p198
      %p200 = scmp.le.s32.totalorder 1, %s14
      %p201 = scmp.lt.s32.totalorder %s14, 3
      %p202 = pnand %p200, %p201
      %p203 = pneg %p202
      // Predicated region
      $region9: #{tpu_custom_call.1} parent=5 // pred_check
        _
      $region10: #{tpu_custom_call.1} parent=5 // pred_check_branch
        %205 = sbr.rel (%p202) target = $region12
      $region11: #{tpu_custom_call.1} parent=5 // pred_region
        %s206 = ssub.s32 %s14, 1
        // Predicated region
        $region13: #{tpu_custom_call.1} parent=11 // pred_check
          %p207 = pneg %p61
        $region14: #{tpu_custom_call.1} parent=11 // pred_check_branch
          %209 = sbr.rel (%p207) target = $region16
        $region15: #{tpu_custom_call.1} parent=11 // pred_region
          _
        $region16: #{tpu_custom_call.1} parent=11 // pred_fallthru
          _
        // Predicated region
        $region17: #{tpu_custom_call.1} parent=11 // pred_check
          %p210 = pneg %p82
        $region18: #{tpu_custom_call.1} parent=11 // pred_check_branch
          %212 = sbr.rel (%p210) target = $region20
        $region19: #{tpu_custom_call.1} parent=11 // pred_region
          _
        $region20: #{tpu_custom_call.1} parent=11 // pred_fallthru
          _
        // Predicated region
        $region21: #{tpu_custom_call.1} parent=11 // pred_check
          %p213 = pneg %p103
        $region22: #{tpu_custom_call.1} parent=11 // pred_check_branch
          %215 = sbr.rel (%p213) target = $region24
        $region23: #{tpu_custom_call.1} parent=11 // pred_region
          %s217 = ssub.s32 8192, 8192
          %218 = vsyncadd [#allocation3], %s217
          %s219 = sshll.u32 [#allocation2], 4
          %s220 = int_to_ptr.vmem [resolvable:$true] %s219
          %225 = dma.hbm_to_vmem [thread:$0]  %s3, 8192, %s220, [#allocation3], 256, 256, 16
        $region24: #{tpu_custom_call.1} parent=11 // pred_fallthru
          _
        // Predicated region
        $region25: #{tpu_custom_call.1} parent=11 // pred_check
          %p226 = pneg %p124
        $region26: #{tpu_custom_call.1} parent=11 // pred_check_branch
          %228 = sbr.rel (%p226) target = $region28
        $region27: #{tpu_custom_call.1} parent=11 // pred_region
          _
        $region28: #{tpu_custom_call.1} parent=11 // pred_fallthru
          _
        // Predicated region
        $region29: #{tpu_custom_call.1} parent=11 // pred_check
          %p229 = pneg %p145
        $region30: #{tpu_custom_call.1} parent=11 // pred_check_branch
          %231 = sbr.rel (%p229) target = $region32
        $region31: #{tpu_custom_call.1} parent=11 // pred_region
          _
        $region32: #{tpu_custom_call.1} parent=11 // pred_fallthru
          _
        // Predicated region
        $region33: #{tpu_custom_call.1} parent=11 // pred_check
          %p232 = pneg %p166
        $region34: #{tpu_custom_call.1} parent=11 // pred_check_branch
          %234 = sbr.rel (%p232) target = $region36
        $region35: #{tpu_custom_call.1} parent=11 // pred_region
          _
        $region36: #{tpu_custom_call.1} parent=11 // pred_fallthru
          _
      $region12: #{tpu_custom_call.1} parent=5 // pred_fallthru
        _
      %p235 = scmp.lt.s32.totalorder %s14, 2
      // Predicated region
      $region37: #{tpu_custom_call.1} parent=5 // pred_check
        %p236 = pneg %p235
      $region38: #{tpu_custom_call.1} parent=5 // pred_check_branch
        %238 = sbr.rel (%p236) target = $region40
      $region39: #{tpu_custom_call.1} parent=5 // pred_region
        // Predicated region
        $region41: #{tpu_custom_call.1} parent=39 // pred_check
          %p239 = pneg %p34
        $region42: #{tpu_custom_call.1} parent=39 // pred_check_branch
          %241 = sbr.rel (%p239) target = $region44
        $region43: #{tpu_custom_call.1} parent=39 // pred_region
          %s242 = smul.u32 3, %s14
          %p243 = scmp.lt.s32.totalorder %s242, 5
          %s244 = scalar_select %p243, %s242, 5
          %s245 = smul.addr %s244, 8
          %s246 = scalar_lea.vmem %s0, %s245
          %s247 = smul.u32 3, %s14
        $region44: #{tpu_custom_call.1} parent=39 // pred_fallthru
          _
      $region40: #{tpu_custom_call.1} parent=5 // pred_fallthru
        _
      %p248 = scmp.le.s32.totalorder 1, %s14
      %p249 = scmp.lt.s32.totalorder %s14, 3
      %p250 = pnand %p248, %p249
      %p251 = pneg %p250
      // Predicated region
      $region45: #{tpu_custom_call.1} parent=5 // pred_check
        _
      $region46: #{tpu_custom_call.1} parent=5 // pred_check_branch
        %253 = sbr.rel (%p250) target = $region48
      $region47: #{tpu_custom_call.1} parent=5 // pred_region
        %s254 = ssub.s32 %s14, 1
        // Predicated region
        $region49: #{tpu_custom_call.1} parent=47 // pred_check
          %p255 = pneg %p103
        $region50: #{tpu_custom_call.1} parent=47 // pred_check_branch
          %257 = sbr.rel (%p255) target = $region52
        $region51: #{tpu_custom_call.1} parent=47 // pred_region
          %258 = dma.done [#allocation3], 8192
        $region52: #{tpu_custom_call.1} parent=47 // pred_fallthru
          _
        %s259 = smul.u32 3, %s19
        %p260 = scmp.lt.s32.totalorder %s259, 5
        %s261 = scalar_select %p260, %s259, 5
        %s262 = smul.addr %s261, 8
        %s263 = scalar_lea.vmem %s0, %s262
        %p264 = pneg %p40
        %p265 = pneg %p37
        %p266 = pneg %p61
        %p267 = pneg %p58
        %p268 = pneg %p82
        %p269 = pneg %p79
        %p270 = pneg %p103
        %p271 = pneg %p100
        %p272 = pneg %p124
        %p273 = pneg %p121
        %p274 = pneg %p145
        %p275 = pneg %p142
        %p276 = pneg %p166
        %p277 = pneg %p163
        %p278 = pneg %p192
        %p279 = pneg %p189
        %s280 = smul.u32 3, %s19
        %p281 = scmp.lt.s32.totalorder %s280, 5
        %s282 = scalar_select %p281, %s280, 5
        %s283 = smul.addr %s282, 8
        %s284 = scalar_lea.vmem %s7, %s283
        %s285 = smul.u32 3, %s19
        %p286 = scmp.lt.s32.totalorder %s285, 5
        %s287 = scalar_select %p286, %s285, 5
        %s288 = smul.addr %s287, 8
        %s289 = scalar_lea.vmem %s0, %s288
        %s290 = smul.u32 3, %s19
        %s291 = smul.u32 3, %s19
        %p292 = scmp.lt.s32.totalorder %s291, 5
        %s293 = scalar_select %p292, %s291, 5
        %s294 = smul.addr %s293, 8
        %s295 = scalar_lea.vmem %s7, %s294
        %s296 = smul.u32 3, %s19
        %v297 = vld [vmem:[%s289] sm:$0xff]
        %v298 = vld [vmem:[%s289 + $0x8] sm:$0xff]
        %v299 = vld [vmem:[%s289 + $0x10] sm:$0xff]
        %v300 = vld [vmem:[%s1] sm:$0xff]
        %v301 = vld [vmem:[%s1 + $0x8] sm:$0xff]
        %v302 = vld [vmem:[%s1 + $0x10] sm:$0xff]
        %v303 = vld [vmem:[%s1 + $0x18] sm:$0xff]
        %v304 = vld [vmem:[%s2] sm:$0x3]
        %v306 = vlaneseq
        %v307 = vshrl.u32 %v306, 7
        %v308 = vsub.s32 0, %v307
        %v309 = vrot.slane %v304, %v308
        %v310 = vlaneseq
        %v311 = vshrl.u32 %v310, 7
        %v312 = vsub.s32 1, %v311
        %v313 = vrot.slane %v304, %v312
        %vm316 = vcmask 130048
        %v318 = vsel %vm316, %v297, 0
        %v321 = vsel %vm316, %v298, 0
        %v324 = vsel %vm316, %v299, 0
        %326 = vmatprep.subr.mxu0 %v301
        %327 = vmatpush1.msra.mxu0 %v300
        %328 = vmatprep.subr.mxu0 %v303
        %329 = vmatpush1.msra.mxu0 %v302
        %330 = vmatprep.subr.mxu0 0.0
        %331 = vmatpush1.msra.mxu0 0.0
        %332 = vmatprep.subr.mxu0 0.0
        %333 = vmatpush1.msra.mxu0 0.0
        %334 = vmatprep.subr.mxu0 0.0
        %335 = vmatpush1.msra.mxu0 0.0
        %336 = vmatprep.subr.mxu0 0.0
        %337 = vmatpush1.msra.mxu0 0.0
        %338 = vmatprep.subr.mxu0 0.0
        %339 = vmatpush1.msra.mxu0 0.0
        %340 = vmatprep.subr.mxu0 0.0
        %341 = vmatpush1.msra.mxu0 0.0
        %342 = vmatprep.subr.mxu0 0.0
        %343 = vmatpush1.msra.mxu0 0.0
        %344 = vmatprep.subr.mxu0 0.0
        %345 = vmatpush1.msra.mxu0 0.0
        %346 = vmatprep.subr.mxu0 0.0
        %347 = vmatpush1.msra.mxu0 0.0
        %348 = vmatprep.subr.mxu0 0.0
        %349 = vmatpush1.msra.mxu0 0.0
        %350 = vmatprep.subr.mxu0 0.0
        %351 = vmatpush1.msra.mxu0 0.0
        %352 = vmatprep.subr.mxu0 0.0
        %353 = vmatpush1.msra.mxu0 0.0
        %354 = vmatprep.subr.mxu0 0.0
        %355 = vmatpush1.msra.mxu0 0.0
        %356 = vmatprep.subr.mxu0 0.0
        %357 = vmatpush1.msra.mxu0 0.0
        %358 = vmatprep.subr.mxu0 0.0
        %359 = vmatpush1.msra.mxu0 0.0
        %360 = vmatprep.subr.mxu0 0.0
        %361 = vmatpush1.msra.mxu0 0.0
        %362 = vmatprep.subr.mxu0 0.0
        %363 = vmatpush1.msra.mxu0 0.0
        %364 = vmatprep.subr.mxu0 0.0
        %365 = vmatpush1.msra.mxu0 0.0
        %366 = vmatprep.subr.mxu0 0.0
        %367 = vmatpush1.msra.mxu0 0.0
        %368 = vmatprep.subr.mxu0 0.0
        %369 = vmatpush1.msra.mxu0 0.0
        %370 = vmatprep.subr.mxu0 0.0
        %371 = vmatpush1.msra.mxu0 0.0
        %372 = vmatprep.subr.mxu0 0.0
        %373 = vmatpush1.msra.mxu0 0.0
        %374 = vmatprep.subr.mxu0 0.0
        %375 = vmatpush1.msra.mxu0 0.0
        %376 = vmatprep.subr.mxu0 0.0
        %377 = vmatpush1.msra.mxu0 0.0
        %378 = vmatprep.subr.mxu0 0.0
        %379 = vmatpush1.msra.mxu0 0.0
        %380 = vmatprep.subr.mxu0 0.0
        %381 = vmatpush1.msra.mxu0 0.0
        %382 = vmatprep.subr.mxu0 0.0
        %383 = vmatpush1.msra.mxu0 0.0
        %384 = vmatprep.subr.mxu0 0.0
        %385 = vmatpush1.msra.mxu0 0.0
        %386 = vmatprep.subr.mxu0 0.0
        %387 = vmatpush1.msra.mxu0 0.0
        %388 = vmatprep.subr.mxu0 0.0
        %389 = vmatpush1.msra.mxu0 0.0
        %390 = vmatprep.mubr.f32.mxu0 0.0
        %391 = vmatmul.mubr.f32.gmra.mrb[0].mxu0 %v318
        %v392 = vpop.f32.mrb[0].mxu0
        %v393 = vadd.f32 %v309, %v392
        %v394 = vpop.f32.mrb[0].mxu0
        %v395 = vadd.f32 %v313, %v394
        %396 = vmatprep.mubr.f32.mxu0 0.0
        %397 = vmatmul.mubr.f32.gmra.mrb[0].mxu0 %v321
        %v398 = vpop.f32.mrb[0].mxu0
        %v399 = vadd.f32 %v309, %v398
        %v400 = vpop.f32.mrb[0].mxu0
        %v401 = vadd.f32 %v313, %v400
        %402 = vmatprep.mubr.f32.mxu0 0.0
        %403 = vmatmul.mubr.f32.gmra.mrb[0].mxu0 %v324
        %v404 = vpop.f32.mrb[0].mxu0
        %v405 = vadd.f32 %v309, %v404
        %v406 = vpop.f32.mrb[0].mxu0
        %v407 = vadd.f32 %v313, %v406
        %408 = vdwg.mxu0
        %v409 = vmax.f32 %v393, 0.0
        %v410 = vmax.f32 %v395, 0.0
        %v411 = vmax.f32 %v399, 0.0
        %v412 = vmax.f32 %v401, 0.0
        %v413 = vmax.f32 %v405, 0.0
        %v414 = vmax.f32 %v407, 0.0
        %v415 = vld [vmem:[#allocation2] sm:$0xff]
        %v416 = vld [vmem:[#allocation2 + $0x8] sm:$0xff]
        %v417 = vld [vmem:[#allocation2 + $0x10] sm:$0xff]
        %v418 = vld [vmem:[#allocation2 + $0x18] sm:$0xff]
        %v419 = vld [vmem:[#allocation2 + $0x20] sm:$0xff]
        %v420 = vld [vmem:[#allocation2 + $0x28] sm:$0xff]
        %v421 = vld [vmem:[#allocation2 + $0x30] sm:$0xff]
        %v422 = vld [vmem:[#allocation2 + $0x38] sm:$0xff]
        %v423 = vld [vmem:[#allocation2 + $0x40] sm:$0xff]
        %v424 = vld [vmem:[#allocation2 + $0x48] sm:$0xff]
        %v425 = vld [vmem:[#allocation2 + $0x50] sm:$0xff]
        %v426 = vld [vmem:[#allocation2 + $0x58] sm:$0xff]
        %v427 = vld [vmem:[#allocation2 + $0x60] sm:$0xff]
        %v428 = vld [vmem:[#allocation2 + $0x68] sm:$0xff]
        %v429 = vld [vmem:[#allocation2 + $0x70] sm:$0xff]
        %v430 = vld [vmem:[#allocation2 + $0x78] sm:$0xff]
        %v431 = vld [vmem:[#allocation2 + $0x80] sm:$0xff]
        %v432 = vld [vmem:[#allocation2 + $0x88] sm:$0xff]
        %v433 = vld [vmem:[#allocation2 + $0x90] sm:$0xff]
        %v434 = vld [vmem:[#allocation2 + $0x98] sm:$0xff]
        %v435 = vld [vmem:[#allocation2 + $0xa0] sm:$0xff]
        %v436 = vld [vmem:[#allocation2 + $0xa8] sm:$0xff]
        %v437 = vld [vmem:[#allocation2 + $0xb0] sm:$0xff]
        %v438 = vld [vmem:[#allocation2 + $0xb8] sm:$0xff]
        %v439 = vld [vmem:[#allocation2 + $0xc0] sm:$0xff]
        %v440 = vld [vmem:[#allocation2 + $0xc8] sm:$0xff]
        %v441 = vld [vmem:[#allocation2 + $0xd0] sm:$0xff]
        %v442 = vld [vmem:[#allocation2 + $0xd8] sm:$0xff]
        %v443 = vld [vmem:[#allocation2 + $0xe0] sm:$0xff]
        %v444 = vld [vmem:[#allocation2 + $0xe8] sm:$0xff]
        %v445 = vld [vmem:[#allocation2 + $0xf0] sm:$0xff]
        %v446 = vld [vmem:[#allocation2 + $0xf8] sm:$0xff]
        %v447 = vld [vmem:[#allocation2 + $0x100] sm:$0xff]
        %v448 = vld [vmem:[#allocation2 + $0x108] sm:$0xff]
        %v449 = vld [vmem:[#allocation2 + $0x110] sm:$0xff]
        %v450 = vld [vmem:[#allocation2 + $0x118] sm:$0xff]
        %v451 = vld [vmem:[#allocation2 + $0x120] sm:$0xff]
        %v452 = vld [vmem:[#allocation2 + $0x128] sm:$0xff]
        %v453 = vld [vmem:[#allocation2 + $0x130] sm:$0xff]
        %v454 = vld [vmem:[#allocation2 + $0x138] sm:$0xff]
        %v455 = vld [vmem:[#allocation2 + $0x140] sm:$0xff]
        %v456 = vld [vmem:[#allocation2 + $0x148] sm:$0xff]
        %v457 = vld [vmem:[#allocation2 + $0x150] sm:$0xff]
        %v458 = vld [vmem:[#allocation2 + $0x158] sm:$0xff]
        %v459 = vld [vmem:[#allocation2 + $0x160] sm:$0xff]
        %v460 = vld [vmem:[#allocation2 + $0x168] sm:$0xff]
        %v461 = vld [vmem:[#allocation2 + $0x170] sm:$0xff]
        %v462 = vld [vmem:[#allocation2 + $0x178] sm:$0xff]
        %v463 = vld [vmem:[#allocation2 + $0x180] sm:$0xff]
        %v464 = vld [vmem:[#allocation2 + $0x188] sm:$0xff]
        %v465 = vld [vmem:[#allocation2 + $0x190] sm:$0xff]
        %v466 = vld [vmem:[#allocation2 + $0x198] sm:$0xff]
        %v467 = vld [vmem:[#allocation2 + $0x1a0] sm:$0xff]
        %v468 = vld [vmem:[#allocation2 + $0x1a8] sm:$0xff]
        %v469 = vld [vmem:[#allocation2 + $0x1b0] sm:$0xff]
        %v470 = vld [vmem:[#allocation2 + $0x1b8] sm:$0xff]
        %v471 = vld [vmem:[#allocation2 + $0x1c0] sm:$0xff]
        %v472 = vld [vmem:[#allocation2 + $0x1c8] sm:$0xff]
        %v473 = vld [vmem:[#allocation2 + $0x1d0] sm:$0xff]
        %v474 = vld [vmem:[#allocation2 + $0x1d8] sm:$0xff]
        %v475 = vld [vmem:[#allocation2 + $0x1e0] sm:$0xff]
        %v476 = vld [vmem:[#allocation2 + $0x1e8] sm:$0xff]
        %v477 = vld [vmem:[#allocation2 + $0x1f0] sm:$0xff]
        %v478 = vld [vmem:[#allocation2 + $0x1f8] sm:$0xff]
        %v479 = vld [vmem:[%s4] sm:$0x3]
        %v481 = vlaneseq
        %v482 = vshrl.u32 %v481, 7
        %v483 = vsub.s32 0, %v482
        %v484 = vrot.slane %v479, %v483
        %v485 = vlaneseq
        %v486 = vshrl.u32 %v485, 7
        %v487 = vsub.s32 1, %v486
        %v488 = vrot.slane %v479, %v487
        %491 = vmatprep.subr.mxu0 %v416
        %492 = vmatpush1.msra.mxu0 %v415
        %493 = vmatprep.subr.mxu0 %v418
        %494 = vmatpush1.msra.mxu0 %v417
        %495 = vmatprep.subr.mxu0 %v420
        %496 = vmatpush1.msra.mxu0 %v419
        %497 = vmatprep.subr.mxu0 %v422
        %498 = vmatpush1.msra.mxu0 %v421
        %499 = vmatprep.subr.mxu0 %v424
        %500 = vmatpush1.msra.mxu0 %v423
        %501 = vmatprep.subr.mxu0 %v426
        %502 = vmatpush1.msra.mxu0 %v425
        %503 = vmatprep.subr.mxu0 %v428
        %504 = vmatpush1.msra.mxu0 %v427
        %505 = vmatprep.subr.mxu0 %v430
        %506 = vmatpush1.msra.mxu0 %v429
        %507 = vmatprep.subr.mxu0 %v432
        %508 = vmatpush1.msra.mxu0 %v431
        %509 = vmatprep.subr.mxu0 %v434
        %510 = vmatpush1.msra.mxu0 %v433
        %511 = vmatprep.subr.mxu0 %v436
        %512 = vmatpush1.msra.mxu0 %v435
        %513 = vmatprep.subr.mxu0 %v438
        %514 = vmatpush1.msra.mxu0 %v437
        %515 = vmatprep.subr.mxu0 %v440
        %516 = vmatpush1.msra.mxu0 %v439
        %517 = vmatprep.subr.mxu0 %v442
        %518 = vmatpush1.msra.mxu0 %v441
        %519 = vmatprep.subr.mxu0 %v444
        %520 = vmatpush1.msra.mxu0 %v443
        %521 = vmatprep.subr.mxu0 %v446
        %522 = vmatpush1.msra.mxu0 %v445
        %523 = vmatprep.subr.mxu0 %v448
        %524 = vmatpush1.msra.mxu0 %v447
        %525 = vmatprep.subr.mxu0 %v450
        %526 = vmatpush1.msra.mxu0 %v449
        %527 = vmatprep.subr.mxu0 %v452
        %528 = vmatpush1.msra.mxu0 %v451
        %529 = vmatprep.subr.mxu0 %v454
        %530 = vmatpush1.msra.mxu0 %v453
        %531 = vmatprep.subr.mxu0 %v456
        %532 = vmatpush1.msra.mxu0 %v455
        %533 = vmatprep.subr.mxu0 %v458
        %534 = vmatpush1.msra.mxu0 %v457
        %535 = vmatprep.subr.mxu0 %v460
        %536 = vmatpush1.msra.mxu0 %v459
        %537 = vmatprep.subr.mxu0 %v462
        %538 = vmatpush1.msra.mxu0 %v461
        %539 = vmatprep.subr.mxu0 %v464
        %540 = vmatpush1.msra.mxu0 %v463
        %541 = vmatprep.subr.mxu0 %v466
        %542 = vmatpush1.msra.mxu0 %v465
        %543 = vmatprep.subr.mxu0 %v468
        %544 = vmatpush1.msra.mxu0 %v467
        %545 = vmatprep.subr.mxu0 %v470
        %546 = vmatpush1.msra.mxu0 %v469
        %547 = vmatprep.subr.mxu0 %v472
        %548 = vmatpush1.msra.mxu0 %v471
        %549 = vmatprep.subr.mxu0 %v474
        %550 = vmatpush1.msra.mxu0 %v473
        %551 = vmatprep.subr.mxu0 %v476
        %552 = vmatpush1.msra.mxu0 %v475
        %553 = vmatprep.subr.mxu0 %v478
        %554 = vmatpush1.msra.mxu0 %v477
        %555 = vmatprep.mubr.f32.mxu0 %v410
        %556 = vmatmul.mubr.f32.gmra.mrb[0].mxu0 %v409
        %v557 = vpop.f32.mrb[0].mxu0
        %v558 = vadd.f32 %v484, %v557
        %v559 = vpop.f32.mrb[0].mxu0
        %v560 = vadd.f32 %v488, %v559
        %561 = vmatprep.mubr.f32.mxu0 %v412
        %562 = vmatmul.mubr.f32.gmra.mrb[0].mxu0 %v411
        %v563 = vpop.f32.mrb[0].mxu0
        %v564 = vadd.f32 %v484, %v563
        %v565 = vpop.f32.mrb[0].mxu0
        %v566 = vadd.f32 %v488, %v565
        %567 = vmatprep.mubr.f32.mxu0 %v414
        %568 = vmatmul.mubr.f32.gmra.mrb[0].mxu0 %v413
        %v569 = vpop.f32.mrb[0].mxu0
        %v570 = vadd.f32 %v484, %v569
        %v571 = vpop.f32.mrb[0].mxu0
        %v572 = vadd.f32 %v488, %v571
        %573 = vdwg.mxu0
        %v574 = vmax.f32 %v558, 0.0
        %v575 = vmax.f32 %v560, 0.0
        %v576 = vmax.f32 %v564, 0.0
        %v577 = vmax.f32 %v566, 0.0
        %v578 = vmax.f32 %v570, 0.0
        %v579 = vmax.f32 %v572, 0.0
        %v580 = vld [vmem:[%s5] sm:$0xff]
        %v581 = vld [vmem:[%s5 + $0x8] sm:$0xff]
        %v582 = vld [vmem:[%s5 + $0x10] sm:$0xff]
        %v583 = vld [vmem:[%s5 + $0x18] sm:$0xff]
        %v584 = vld [vmem:[%s5 + $0x20] sm:$0xff]
        %v585 = vld [vmem:[%s5 + $0x28] sm:$0xff]
        %v586 = vld [vmem:[%s5 + $0x30] sm:$0xff]
        %v587 = vld [vmem:[%s5 + $0x38] sm:$0xff]
        %v588 = vld [vmem:[%s5 + $0x40] sm:$0xff]
        %v589 = vld [vmem:[%s5 + $0x48] sm:$0xff]
        %v590 = vld [vmem:[%s5 + $0x50] sm:$0xff]
        %v591 = vld [vmem:[%s5 + $0x58] sm:$0xff]
        %v592 = vld [vmem:[%s5 + $0x60] sm:$0xff]
        %v593 = vld [vmem:[%s5 + $0x68] sm:$0xff]
        %v594 = vld [vmem:[%s5 + $0x70] sm:$0xff]
        %v595 = vld [vmem:[%s5 + $0x78] sm:$0xff]
        %v596 = vld [vmem:[%s5 + $0x80] sm:$0xff]
        %v597 = vld [vmem:[%s5 + $0x88] sm:$0xff]
        %v598 = vld [vmem:[%s5 + $0x90] sm:$0xff]
        %v599 = vld [vmem:[%s5 + $0x98] sm:$0xff]
        %v600 = vld [vmem:[%s5 + $0xa0] sm:$0xff]
        %v601 = vld [vmem:[%s5 + $0xa8] sm:$0xff]
        %v602 = vld [vmem:[%s5 + $0xb0] sm:$0xff]
        %v603 = vld [vmem:[%s5 + $0xb8] sm:$0xff]
        %v604 = vld [vmem:[%s5 + $0xc0] sm:$0xff]
        %v605 = vld [vmem:[%s5 + $0xc8] sm:$0xff]
        %v606 = vld [vmem:[%s5 + $0xd0] sm:$0xff]
        %v607 = vld [vmem:[%s5 + $0xd8] sm:$0xff]
        %v608 = vld [vmem:[%s5 + $0xe0] sm:$0xff]
        %v609 = vld [vmem:[%s5 + $0xe8] sm:$0xff]
        %v610 = vld [vmem:[%s5 + $0xf0] sm:$0xff]
        %v611 = vld [vmem:[%s5 + $0xf8] sm:$0xff]
        %v612 = vld [vmem:[%s6] sm:$0x1]
        %v614 = vlaneseq
        %v615 = vshrl.u32 %v614, 7
        %v616 = vsub.s32 0, %v615
        %v617 = vrot.slane %v612, %v616
        %619 = vmatprep.subr.mxu0 0.0
        %620 = vmatpush1.msra.mxu0 %v580
        %621 = vmatprep.subr.mxu0 0.0
        %622 = vmatpush1.msra.mxu0 %v581
        %623 = vmatprep.subr.mxu0 0.0
        %624 = vmatpush1.msra.mxu0 %v582
        %625 = vmatprep.subr.mxu0 0.0
        %626 = vmatpush1.msra.mxu0 %v583
        %627 = vmatprep.subr.mxu0 0.0
        %628 = vmatpush1.msra.mxu0 %v584
        %629 = vmatprep.subr.mxu0 0.0
        %630 = vmatpush1.msra.mxu0 %v585
        %631 = vmatprep.subr.mxu0 0.0
        %632 = vmatpush1.msra.mxu0 %v586
        %633 = vmatprep.subr.mxu0 0.0
        %634 = vmatpush1.msra.mxu0 %v587
        %635 = vmatprep.subr.mxu0 0.0
        %636 = vmatpush1.msra.mxu0 %v588
        %637 = vmatprep.subr.mxu0 0.0
        %638 = vmatpush1.msra.mxu0 %v589
        %639 = vmatprep.subr.mxu0 0.0
        %640 = vmatpush1.msra.mxu0 %v590
        %641 = vmatprep.subr.mxu0 0.0
        %642 = vmatpush1.msra.mxu0 %v591
        %643 = vmatprep.subr.mxu0 0.0
        %644 = vmatpush1.msra.mxu0 %v592
        %645 = vmatprep.subr.mxu0 0.0
        %646 = vmatpush1.msra.mxu0 %v593
        %647 = vmatprep.subr.mxu0 0.0
        %648 = vmatpush1.msra.mxu0 %v594
        %649 = vmatprep.subr.mxu0 0.0
        %650 = vmatpush1.msra.mxu0 %v595
        %651 = vmatprep.subr.mxu0 0.0
        %652 = vmatpush1.msra.mxu0 %v596
        %653 = vmatprep.subr.mxu0 0.0
        %654 = vmatpush1.msra.mxu0 %v597
        %655 = vmatprep.subr.mxu0 0.0
        %656 = vmatpush1.msra.mxu0 %v598
        %657 = vmatprep.subr.mxu0 0.0
        %658 = vmatpush1.msra.mxu0 %v599
        %659 = vmatprep.subr.mxu0 0.0
        %660 = vmatpush1.msra.mxu0 %v600
        %661 = vmatprep.subr.mxu0 0.0
        %662 = vmatpush1.msra.mxu0 %v601
        %663 = vmatprep.subr.mxu0 0.0
        %664 = vmatpush1.msra.mxu0 %v602
        %665 = vmatprep.subr.mxu0 0.0
        %666 = vmatpush1.msra.mxu0 %v603
        %667 = vmatprep.subr.mxu0 0.0
        %668 = vmatpush1.msra.mxu0 %v604
        %669 = vmatprep.subr.mxu0 0.0
        %670 = vmatpush1.msra.mxu0 %v605
        %671 = vmatprep.subr.mxu0 0.0
        %672 = vmatpush1.msra.mxu0 %v606
        %673 = vmatprep.subr.mxu0 0.0
        %674 = vmatpush1.msra.mxu0 %v607
        %675 = vmatprep.subr.mxu0 0.0
        %676 = vmatpush1.msra.mxu0 %v608
        %677 = vmatprep.subr.mxu0 0.0
        %678 = vmatpush1.msra.mxu0 %v609
        %679 = vmatprep.subr.mxu0 0.0
        %680 = vmatpush1.msra.mxu0 %v610
        %681 = vmatprep.subr.mxu0 0.0
        %682 = vmatpush1.msra.mxu0 %v611
        %683 = vmatprep.mubr.f32.mxu0 %v575
        %684 = vmatmul.mubr.f32.gmra.mrb[0].mxu0 %v574
        %v685 = vpop.f32.mrb[0].mxu0
        %v686 = vadd.f32 %v617, %v685
        %v687 = vpop.f32.mrb[0].mxu0
        %688 = vmatprep.mubr.f32.mxu0 %v577
        %689 = vmatmul.mubr.f32.gmra.mrb[0].mxu0 %v576
        %v690 = vpop.f32.mrb[0].mxu0
        %v691 = vadd.f32 %v617, %v690
        %v692 = vpop.f32.mrb[0].mxu0
        %693 = vmatprep.mubr.f32.mxu0 %v579
        %694 = vmatmul.mubr.f32.gmra.mrb[0].mxu0 %v578
        %v695 = vpop.f32.mrb[0].mxu0
        %v696 = vadd.f32 %v617, %v695
        %v697 = vpop.f32.mrb[0].mxu0
        %698 = vdwg.mxu0
        %vm699 = vcmask 64512
        %700 = vst.msk [vmem:[%s295] sm:$0xff] %vm699, %v686
        %701 = vst.msk [vmem:[%s295 + $0x8] sm:$0xff] %vm699, %v691
        %702 = vst.msk [vmem:[%s295 + $0x10] sm:$0xff] %vm699, %v696
        %s703 = smul.u32 3, %s19
        %p704 = scmp.lt.s32.totalorder %s703, 5
        %s705 = scalar_select %p704, %s703, 5
        %s706 = smul.addr %s705, 8
        %s707 = scalar_lea.vmem %s7, %s706
        // Predicated region
        $region53: #{tpu_custom_call.1} parent=47 // pred_check
          %p708 = pneg %p189
        $region54: #{tpu_custom_call.1} parent=47 // pred_check_branch
          %710 = sbr.rel (%p708) target = $region56
        $region55: #{tpu_custom_call.1} parent=47 // pred_region
          %s711 = smul.u32 3, %s19
        $region56: #{tpu_custom_call.1} parent=47 // pred_fallthru
          _
      $region48: #{tpu_custom_call.1} parent=5 // pred_fallthru
        _
      %p712 = scmp.le.s32.totalorder 2, %s14
      // Predicated region
      $region57: #{tpu_custom_call.1} parent=5 // pred_check
        %p713 = pneg %p712
      $region58: #{tpu_custom_call.1} parent=5 // pred_check_branch
        %715 = sbr.rel (%p713) target = $region60
      $region59: #{tpu_custom_call.1} parent=5 // pred_region
        %s716 = ssub.s32 %s14, 2
        // Predicated region
        $region61: #{tpu_custom_call.1} parent=59 // pred_check
          %p717 = pneg %p195
        $region62: #{tpu_custom_call.1} parent=59 // pred_check_branch
          %719 = sbr.rel (%p717) target = $region64
        $region63: #{tpu_custom_call.1} parent=59 // pred_region
          %s720 = smul.u32 3, %s20
          %p721 = scmp.lt.s32.totalorder %s720, 5
          %s722 = scalar_select %p721, %s720, 5
          %s723 = smul.addr %s722, 8
          %s724 = scalar_lea.vmem %s7, %s723
        $region64: #{tpu_custom_call.1} parent=59 // pred_fallthru
          _
      $region60: #{tpu_custom_call.1} parent=5 // pred_fallthru
        _
    $region6: #{tpu_custom_call.1} parent=1 // loop_footer
      %s18 = sadd.s32 1, %s14
    $region7: #{tpu_custom_call.1} parent=1 // loop_footer_branch
      %13 = sbr.rel target = $region3
    $region8: #{tpu_custom_call.1} parent=1 // loop_exit
      _
    %725 = vsyncpa [#allocation3], 1
    %s726 = scalar_lea.sflag [#allocation3], 1
    %727 = vsyncpa %s726, 1

</llo_original>
